<compile_context>
chip_gen: v5e
topology: v5e:2x2
jax: 0.10.0
libtpu: 0.0.40
codegen_flags: <defaults>
</compile_context>

<pallas_src>
import functools

import jax
import jax.numpy as jnp
from jax.experimental import pallas as pl
from jax.experimental.pallas import tpu as pltpu


def _round_up(x, m):
    return ((x + m - 1) // m) * m


def ae_kernel(x_ref,
              w1_ref, b1_ref,
              w2_ref, b2_ref,
              w3_ref, b3_ref,
              w4_ref, b4_ref,
              out_ref):
    # Cast the streamed activation block to the matmul dtype *inside* the
    # kernel (no separate XLA pass over x in HBM).
    x = x_ref[...].astype(w1_ref.dtype)

    # ---- encoder ----
    h = jnp.dot(x, w1_ref[...], preferred_element_type=jnp.float32) + b1_ref[...]
    h = jnp.maximum(h, 0.0)                                   # ReLU (VPU, f32)
    z = jnp.dot(h.astype(w2_ref.dtype), w2_ref[...],
                preferred_element_type=jnp.float32) + b2_ref[...]
    z = jnp.tanh(z)                                           # Tanh (EUP)

    # ---- decoder ----
    d = jnp.dot(z.astype(w3_ref.dtype), w3_ref[...],
                preferred_element_type=jnp.float32) + b3_ref[...]
    d = jnp.maximum(d, 0.0)                                   # ReLU
    y = jnp.dot(d.astype(w4_ref.dtype), w4_ref[...],
                preferred_element_type=jnp.float32) + b4_ref[...]

    out_ref[...] = y.astype(out_ref.dtype)


def ae_forward(x, params, *, tile_b=None, use_bf16=False, out_dtype=None):
    """Fused AE forward.

    x: (B, input_dim). params: PyTorch-convention weights (out_f, in_f) + biases.
    tile_b:   batch rows per grid step; None -> auto-sized (~2 MiB of x/step).
    use_bf16: cast matmul operands to bf16 with f32 accumulation. Recommended
              on v5e/v6e/v7x (MXU natively takes bf16; elementwise stays f32).
    out_dtype: output dtype (defaults to x.dtype). Pass jnp.bfloat16 to halve
              the writeback stream when the caller tolerates it.
    """
    B, input_dim = x.shape
    hidden_dim = params["w1"].shape[0]
    latent_dim = params["w2"].shape[0]
    out_dtype = x.dtype if out_dtype is None else jnp.dtype(out_dtype)

    # Lane-dense padding for internal feature dims (100 -> 128, 10 -> 128).
    # Do NOT pad further: that only adds zero-FLOPs on 256-wide MXUs.
    hid_p = _round_up(hidden_dim, 128)
    lat_p = _round_up(latent_dim, 128)

    mm_dtype = jnp.bfloat16 if use_bf16 else jnp.float32

    def pad_w(w_t, rows, cols):
        # w_t already transposed to (in, out); zero-pad to (rows, cols).
        return jnp.pad(
            w_t, ((0, rows - w_t.shape[0]), (0, cols - w_t.shape[1]))
        ).astype(mm_dtype)

    def pad_b(b, n):
        return jnp.pad(b, (0, n - b.shape[0])).reshape(1, n).astype(jnp.float32)

    # Transpose to (in, out) so the kernel computes x @ W + b, then zero-pad.
    w1 = pad_w(params["w1"].T, input_dim, hid_p)   # (in,    hid_p)
    w2 = pad_w(params["w2"].T, hid_p, lat_p)       # (hid_p, lat_p)
    w3 = pad_w(params["w3"].T, lat_p, hid_p)       # (lat_p, hid_p)
    w4 = pad_w(params["w4"].T, hid_p, input_dim)   # (hid_p, in)
    b1 = pad_b(params["b1"], hid_p)
    b2 = pad_b(params["b2"], lat_p)
    b3 = pad_b(params["b3"], hid_p)
    b4 = pad_b(params["b4"], input_dim)

    weight_bytes = sum(int(a.size) * a.dtype.itemsize
                       for a in (w1, w2, w3, w4, b1, b2, b3, b4))
    x_itemsize = x.dtype.itemsize
    out_itemsize = jnp.dtype(out_dtype).itemsize

    # ---- batch tile selection (adaptive, VMEM-aware) ----
    if tile_b is None:
        # Target ~2 MiB of x per grid step so the fixed per-step pipeline
        # overhead is amortized (HBM-stream-bound kernel).
        tile_b = (2 << 20) // max(1, input_dim * x_itemsize)
    tile_b = max(8, _round_up(min(int(tile_b), 1 << 15), 8))   # multiple of 8

    # Conservative VMEM budget (fits v5e/v6e/v7x once vmem_limit_bytes is set):
    # double-buffered x/y blocks + double-buffered resident weights + f32
    # intermediate activations.
    vmem_budget = 40 << 20
    per_row = (2 * input_dim * (x_itemsize + out_itemsize)
               + 3 * max(hid_p, lat_p) * 4)
    max_rows = max(8, (vmem_budget - 2 * weight_bytes) // per_row)
    tile_b = min(tile_b, (max_rows // 8) * 8)

    # Never larger than the (8-rounded) batch; guarantee >=2 grid steps when
    # the batch allows it so v7x's second TensorCore gets work.
    B8 = _round_up(B, 8)
    tile_b = min(tile_b, B8)
    if B8 >= 16 and tile_b >= B8:
        tile_b = _round_up(pl.cdiv(B8, 2), 8)

    B_pad = _round_up(B, tile_b)
    x_p = x if B_pad == B else jnp.pad(x, ((0, B_pad - B), (0, 0)))
    grid = (B_pad // tile_b,)

    def whole(arr):
        # Whole-array resident block (constant index_map across the grid).
        # NOTE: could be single-buffered (pl.Buffered(1)); left default since
        # the weights are only ~160-330 KiB.
        return pl.BlockSpec(arr.shape, lambda i: (0,) * arr.ndim)

    # Explicit VMEM limit: enough for this kernel + headroom, capped well
    # under v7x's 64 MiB physical VMEM.
    est_vmem = (2 * weight_bytes
                + 2 * tile_b * input_dim * (x_itemsize + out_itemsize)
                + 3 * tile_b * max(hid_p, lat_p) * 4)
    vmem_limit = int(min(48 << 20, max(16 << 20, 2 * est_vmem)))

    # Real (unpadded) FLOPs; padded bytes for the HBM stream.
    flops = 2 * B * (input_dim * hidden_dim + hidden_dim * latent_dim
                     + latent_dim * hidden_dim + hidden_dim * input_dim)
    bytes_accessed = int(B_pad * input_dim * (x_itemsize + out_itemsize)
                         + weight_bytes)

    out = pl.pallas_call(
        ae_kernel,
        out_shape=jax.ShapeDtypeStruct((B_pad, input_dim), out_dtype),
        grid=grid,
        in_specs=[
            pl.BlockSpec((tile_b, input_dim), lambda i: (i, 0)),  # x stream
            whole(w1), whole(b1),
            whole(w2), whole(b2),
            whole(w3), whole(b3),
            whole(w4), whole(b4),
        ],
        out_specs=pl.BlockSpec((tile_b, input_dim), lambda i: (i, 0)),
        compiler_params=pltpu.CompilerParams(
            dimension_semantics=("parallel",),
            vmem_limit_bytes=vmem_limit,
        ),
        cost_estimate=pl.CostEstimate(
            flops=flops,
            transcendentals=B * latent_dim,
            bytes_accessed=bytes_accessed,
        ),
    )(x_p, w1, b1, w2, b2, w3, b3, w4, b4)

    return out[:B] if B_pad != B else out


def init_params(key, input_dim, hidden_dim=100, latent_dim=10):
    """Deterministic init mimicking nn.Linear's uniform(-1/sqrt(fan_in), ...)."""
    ks = jax.random.split(key, 8)

    def lin(kw, kb, fan_in, fan_out):
        bound = 1.0 / jnp.sqrt(fan_in)
        w = jax.random.uniform(kw, (fan_out, fan_in), jnp.float32, -bound, bound)
        b = jax.random.uniform(kb, (fan_out,), jnp.float32, -bound, bound)
        return w, b

    w1, b1 = lin(ks[0], ks[1], input_dim, hidden_dim)
    w2, b2 = lin(ks[2], ks[3], hidden_dim, latent_dim)
    w3, b3 = lin(ks[4], ks[5], latent_dim, hidden_dim)
    w4, b4 = lin(ks[6], ks[7], hidden_dim, input_dim)
    return dict(w1=w1, b1=b1, w2=w2, b2=b2, w3=w3, b3=b3, w4=w4, b4=b4)


def ae_reference(x, p):
    """Pure-JAX reference matching PyTorch semantics."""
    h = jnp.maximum(x @ p["w1"].T + p["b1"], 0.0)
    z = jnp.tanh(h @ p["w2"].T + p["b2"])
    d = jnp.maximum(z @ p["w3"].T + p["b3"], 0.0)
    return d @ p["w4"].T + p["b4"]


if __name__ == "__main__":
    key = jax.random.PRNGKey(0)
    k_x, k_p, k_x2 = jax.random.split(key, 3)

    batch, input_dim, hidden_dim, latent_dim = 8, 32, 100, 10
    x = jax.random.normal(k_x, (batch, input_dim), jnp.float32)
    params = init_params(k_p, input_dim, hidden_dim, latent_dim)

    # Exact f32 path.
    out = ae_forward(x, params, use_bf16=False)
    jax.block_until_ready(out)
    ref = ae_reference(x, params)
    assert out.shape == (batch, input_dim)
    assert out.dtype == x.dtype
    assert jnp.allclose(out, ref, atol=1e-4, rtol=1e-4)

    # bf16 matmul-operand path (f32 accumulation), multi-step grid.
    batch2 = 64
    x2 = jax.random.normal(k_x2, (batch2, input_dim), jnp.float32)
    out2 = ae_forward(x2, params, use_bf16=True)
    jax.block_until_ready(out2)
    ref2 = ae_reference(x2, params)
    assert out2.shape == (batch2, input_dim)
    assert jnp.allclose(out2, ref2, atol=1e-1, rtol=1e-1)

    print("KERNEL_OK")
</pallas_src>

<mosaic_0001>
module attributes {stable_mosaic.version = 11 : i64} {
  func.func @ae_kernel(%arg0: i32, %arg1: memref<8x32xf32, #tpu.memory_space<vmem>>, %arg2: memref<32x128xf32, #tpu.memory_space<vmem>>, %arg3: memref<1x128xf32, #tpu.memory_space<vmem>>, %arg4: memref<128x128xf32, #tpu.memory_space<vmem>>, %arg5: memref<1x128xf32, #tpu.memory_space<vmem>>, %arg6: memref<128x128xf32, #tpu.memory_space<vmem>>, %arg7: memref<1x128xf32, #tpu.memory_space<vmem>>, %arg8: memref<128x32xf32, #tpu.memory_space<vmem>>, %arg9: memref<1x32xf32, #tpu.memory_space<vmem>>, %arg10: memref<8x32xf32, #tpu.memory_space<vmem>>) attributes {dimension_semantics = [#tpu.dimension_semantics<parallel>], iteration_bounds = array<i64: 1>, scalar_prefetch = 0 : i64, scratch_operands = 0 : i64, tpu.core_type = #tpu.core_type<tc>, window_params = [{transform_indices = @transform_0, window_bounds = array<i64: 8, 32>}, {pipeline_mode = #tpu.pipeline_mode<synchronous>, transform_indices = @transform_1, window_bounds = array<i64: 32, 128>}, {pipeline_mode = #tpu.pipeline_mode<synchronous>, transform_indices = @transform_2, window_bounds = array<i64: 1, 128>}, {pipeline_mode = #tpu.pipeline_mode<synchronous>, transform_indices = @transform_3, window_bounds = array<i64: 128, 128>}, {pipeline_mode = #tpu.pipeline_mode<synchronous>, transform_indices = @transform_4, window_bounds = array<i64: 1, 128>}, {pipeline_mode = #tpu.pipeline_mode<synchronous>, transform_indices = @transform_5, window_bounds = array<i64: 128, 128>}, {pipeline_mode = #tpu.pipeline_mode<synchronous>, transform_indices = @transform_6, window_bounds = array<i64: 1, 128>}, {pipeline_mode = #tpu.pipeline_mode<synchronous>, transform_indices = @transform_7, window_bounds = array<i64: 128, 32>}, {pipeline_mode = #tpu.pipeline_mode<synchronous>, transform_indices = @transform_8, window_bounds = array<i64: 1, 32>}, {transform_indices = @transform_9, window_bounds = array<i64: 8, 32>}]} {
    %c0 = arith.constant 0 : index
    %c0_0 = arith.constant 0 : index
    %0 = vector.load %arg1[%c0, %c0_0] : memref<8x32xf32, #tpu.memory_space<vmem>>, vector<8x32xf32>
    %c0_1 = arith.constant 0 : index
    %c0_2 = arith.constant 0 : index
    %1 = vector.load %arg2[%c0_1, %c0_2] : memref<32x128xf32, #tpu.memory_space<vmem>>, vector<32x128xf32>
    %cst = arith.constant dense<0.000000e+00> : vector<8x128xf32>
    %2 = tpu.matmul %0, %1, %cst {dimension_numbers = #tpu.dot_dimension_numbers<[1], [0], [0], [1], [0, 0, 1, 1], [], []>} : vector<8x32xf32>, vector<32x128xf32>, vector<8x128xf32> -> vector<8x128xf32>
    %c0_3 = arith.constant 0 : index
    %c0_4 = arith.constant 0 : index
    %3 = vector.load %arg3[%c0_3, %c0_4] : memref<1x128xf32, #tpu.memory_space<vmem>>, vector<1x128xf32>
    %4 = vector.broadcast %3 : vector<1x128xf32> to vector<8x128xf32>
    %5 = arith.addf %2, %4 : vector<8x128xf32>
    %cst_5 = arith.constant 0.000000e+00 : f32
    %6 = vector.broadcast %cst_5 : f32 to vector<8x128xf32>
    %7 = arith.maximumf %5, %6 : vector<8x128xf32>
    %c0_6 = arith.constant 0 : index
    %c0_7 = arith.constant 0 : index
    %8 = vector.load %arg4[%c0_6, %c0_7] : memref<128x128xf32, #tpu.memory_space<vmem>>, vector<128x128xf32>
    %cst_8 = arith.constant dense<0.000000e+00> : vector<8x128xf32>
    %9 = tpu.matmul %7, %8, %cst_8 {dimension_numbers = #tpu.dot_dimension_numbers<[1], [0], [0], [1], [0, 0, 1, 1], [], []>} : vector<8x128xf32>, vector<128x128xf32>, vector<8x128xf32> -> vector<8x128xf32>
    %c0_9 = arith.constant 0 : index
    %c0_10 = arith.constant 0 : index
    %10 = vector.load %arg5[%c0_9, %c0_10] : memref<1x128xf32, #tpu.memory_space<vmem>>, vector<1x128xf32>
    %11 = vector.broadcast %10 : vector<1x128xf32> to vector<8x128xf32>
    %12 = arith.addf %9, %11 : vector<8x128xf32>
    %13 = math.tanh %12 : vector<8x128xf32>
    %c0_11 = arith.constant 0 : index
    %c0_12 = arith.constant 0 : index
    %14 = vector.load %arg6[%c0_11, %c0_12] : memref<128x128xf32, #tpu.memory_space<vmem>>, vector<128x128xf32>
    %cst_13 = arith.constant dense<0.000000e+00> : vector<8x128xf32>
    %15 = tpu.matmul %13, %14, %cst_13 {dimension_numbers = #tpu.dot_dimension_numbers<[1], [0], [0], [1], [0, 0, 1, 1], [], []>} : vector<8x128xf32>, vector<128x128xf32>, vector<8x128xf32> -> vector<8x128xf32>
    %c0_14 = arith.constant 0 : index
    %c0_15 = arith.constant 0 : index
    %16 = vector.load %arg7[%c0_14, %c0_15] : memref<1x128xf32, #tpu.memory_space<vmem>>, vector<1x128xf32>
    %17 = vector.broadcast %16 : vector<1x128xf32> to vector<8x128xf32>
    %18 = arith.addf %15, %17 : vector<8x128xf32>
    %cst_16 = arith.constant 0.000000e+00 : f32
    %19 = vector.broadcast %cst_16 : f32 to vector<8x128xf32>
    %20 = arith.maximumf %18, %19 : vector<8x128xf32>
    %c0_17 = arith.constant 0 : index
    %c0_18 = arith.constant 0 : index
    %21 = vector.load %arg8[%c0_17, %c0_18] : memref<128x32xf32, #tpu.memory_space<vmem>>, vector<128x32xf32>
    %cst_19 = arith.constant dense<0.000000e+00> : vector<8x32xf32>
    %22 = tpu.matmul %20, %21, %cst_19 {dimension_numbers = #tpu.dot_dimension_numbers<[1], [0], [0], [1], [0, 0, 1, 1], [], []>} : vector<8x128xf32>, vector<128x32xf32>, vector<8x32xf32> -> vector<8x32xf32>
    %c0_20 = arith.constant 0 : index
    %c0_21 = arith.constant 0 : index
    %23 = vector.load %arg9[%c0_20, %c0_21] : memref<1x32xf32, #tpu.memory_space<vmem>>, vector<1x32xf32>
    %24 = vector.broadcast %23 : vector<1x32xf32> to vector<8x32xf32>
    %25 = arith.addf %22, %24 : vector<8x32xf32>
    %c0_22 = arith.constant 0 : index
    %c0_23 = arith.constant 0 : index
    %26 = vector.load %arg10[%c0_22, %c0_23] : memref<8x32xf32, #tpu.memory_space<vmem>>, vector<8x32xf32>
    tpu.vector_store %arg10[%c0_22, %c0_23], %25 {strides = array<i32>} : memref<8x32xf32, #tpu.memory_space<vmem>>, vector<8x32xf32>,
    return
  }
  func.func @transform_0(%arg0: i32) -> (i32, i32) {
    %c0_i32 = arith.constant 0 : i32
    %c0_i32_0 = arith.constant 0 : i32
    return %arg0, %c0_i32 : i32, i32
  }
  func.func @transform_1(%arg0: i32) -> (i32, i32) {
    %c0_i32 = arith.constant 0 : i32
    %c0_i32_0 = arith.constant 0 : i32
    %c0_i32_1 = arith.constant 0 : i32
    return %c0_i32, %c0_i32_0 : i32, i32
  }
  func.func @transform_2(%arg0: i32) -> (i32, i32) {
    %c0_i32 = arith.constant 0 : i32
    %c0_i32_0 = arith.constant 0 : i32
    %c0_i32_1 = arith.constant 0 : i32
    return %c0_i32, %c0_i32_0 : i32, i32
  }
  func.func @transform_3(%arg0: i32) -> (i32, i32) {
    %c0_i32 = arith.constant 0 : i32
    %c0_i32_0 = arith.constant 0 : i32
    %c0_i32_1 = arith.constant 0 : i32
    return %c0_i32, %c0_i32_0 : i32, i32
  }
  func.func @transform_4(%arg0: i32) -> (i32, i32) {
    %c0_i32 = arith.constant 0 : i32
    %c0_i32_0 = arith.constant 0 : i32
    %c0_i32_1 = arith.constant 0 : i32
    return %c0_i32, %c0_i32_0 : i32, i32
  }
  func.func @transform_5(%arg0: i32) -> (i32, i32) {
    %c0_i32 = arith.constant 0 : i32
    %c0_i32_0 = arith.constant 0 : i32
    %c0_i32_1 = arith.constant 0 : i32
    return %c0_i32, %c0_i32_0 : i32, i32
  }
  func.func @transform_6(%arg0: i32) -> (i32, i32) {
    %c0_i32 = arith.constant 0 : i32
    %c0_i32_0 = arith.constant 0 : i32
    %c0_i32_1 = arith.constant 0 : i32
    return %c0_i32, %c0_i32_0 : i32, i32
  }
  func.func @transform_7(%arg0: i32) -> (i32, i32) {
    %c0_i32 = arith.constant 0 : i32
    %c0_i32_0 = arith.constant 0 : i32
    %c0_i32_1 = arith.constant 0 : i32
    return %c0_i32, %c0_i32_0 : i32, i32
  }
  func.func @transform_8(%arg0: i32) -> (i32, i32) {
    %c0_i32 = arith.constant 0 : i32
    %c0_i32_0 = arith.constant 0 : i32
    %c0_i32_1 = arith.constant 0 : i32
    return %c0_i32, %c0_i32_0 : i32, i32
  }
  func.func @transform_9(%arg0: i32) -> (i32, i32) {
    %c0_i32 = arith.constant 0 : i32
    %c0_i32_0 = arith.constant 0 : i32
    return %arg0, %c0_i32 : i32, i32
  }
}

</mosaic_0001>

<llo_original>
// kernel: tpu_custom_call.1
$region0: #{tpu_custom_call.1}
  #allocation0 [shape = 'u32[]', space=smem, size = 0x4, offset = 0x4, fixed_abs, tag = 'smem constant byte address 0x4 - core index']
  #allocation1 [shape = 'u32[72,128]{1,0:T(1,128)}', space=vmem, size = 0x9000, scoped, tag = 'internal scratch']
  %s0 = inlined_call_operand.hbm [shape: f32[8,32], index: 0, kind: input, shape index: {}]
  %s1 = inlined_call_operand.vmem [shape: f32[32,128], index: 1, kind: input, shape index: {}]
  %s2 = inlined_call_operand.vmem [shape: f32[1,128], index: 2, kind: input, shape index: {}]
  %s3 = inlined_call_operand.vmem [shape: f32[128,128], index: 3, kind: input, shape index: {}]
  %s4 = inlined_call_operand.vmem [shape: f32[1,128], index: 4, kind: input, shape index: {}]
  %s5 = inlined_call_operand.hbm [shape: f32[128,128], index: 5, kind: input, shape index: {}]
  %s6 = inlined_call_operand.vmem [shape: f32[1,128], index: 6, kind: input, shape index: {}]
  %s7 = inlined_call_operand.vmem [shape: f32[128,32], index: 7, kind: input, shape index: {}]
  %s8 = inlined_call_operand.vmem [shape: f32[1,32], index: 8, kind: input, shape index: {}]
  %s9 = inlined_call_operand.hbm [shape: f32[8,32], index: 9, kind: output, shape index: {}]
  %s10 = sld [smem:[#allocation0]]
  $region54: #{tpu_custom_call.1} parent=0
    _
  %s12 = ssub.s32 1, %s10
  %s13 = scalar_select 0, %s12, %s10
  $region1: #{tpu_custom_call.1} parent=0
    #allocation2 [shape = 'u8[4096]{0}', space=vmem, size = 0x1000, scoped, tag = 'input window, operand 0, single buffered']
    #allocation3 [shape = 's32[1]{0}', space=sflag, size = 0x4, scoped, tag = 'scoped memory for tpu_custom_call.1']
    #allocation4 [shape = 's32[1]{0}', space=sflag, size = 0x4, scoped, tag = 'scoped memory for tpu_custom_call.1']
    #allocation5 [shape = 'u8[65536]{0}', space=vmem, size = 0x10000, scoped, tag = 'input window, operand 5, single buffered']
    #allocation6 [shape = 's32[1]{0}', space=sflag, size = 0x4, scoped, tag = 'scoped memory for tpu_custom_call.1']
    #allocation7 [shape = 'u8[4096]{0}', space=vmem, size = 0x1000, scoped, tag = 'output window, operand 0, single buffered']
    %14 = vsyncpa [#allocation3], 0
    %15 = vsyncpa [#allocation6], 0
    %16 = vsyncpa [#allocation4], 0
    // Predicated region
    $region2: #{tpu_custom_call.1} parent=1 // pred_check
      _
    $region3: #{tpu_custom_call.1} parent=1 // pred_check_branch
      %18 = sbr.rel (0) target = $region5
    $region4: #{tpu_custom_call.1} parent=1 // pred_region
      %20 = vsyncadd [#allocation3], 0
      %s22 = sshll.u32 %s0, 4
      %s23 = int_to_ptr.hbm [resolvable:$true] %s22
      %s24 = sshll.u32 [#allocation2], 4
      %s25 = int_to_ptr.vmem [resolvable:$true] %s24
      %27 = dma.hbm_to_vmem [thread:$0]  %s23, 128, %s25, [#allocation3]
    $region5: #{tpu_custom_call.1} parent=1 // pred_fallthru
      _
    // Predicated region
    $region6: #{tpu_custom_call.1} parent=1 // pred_check
      _
    $region7: #{tpu_custom_call.1} parent=1 // pred_check_branch
      %29 = sbr.rel (0) target = $region9
    $region8: #{tpu_custom_call.1} parent=1 // pred_region
      _
    $region9: #{tpu_custom_call.1} parent=1 // pred_fallthru
      _
    // Predicated region
    $region10: #{tpu_custom_call.1} parent=1 // pred_check
      _
    $region11: #{tpu_custom_call.1} parent=1 // pred_check_branch
      %31 = sbr.rel (0) target = $region13
    $region12: #{tpu_custom_call.1} parent=1 // pred_region
      _
    $region13: #{tpu_custom_call.1} parent=1 // pred_fallthru
      _
    // Predicated region
    $region14: #{tpu_custom_call.1} parent=1 // pred_check
      _
    $region15: #{tpu_custom_call.1} parent=1 // pred_check_branch
      %33 = sbr.rel (0) target = $region17
    $region16: #{tpu_custom_call.1} parent=1 // pred_region
      _
    $region17: #{tpu_custom_call.1} parent=1 // pred_fallthru
      _
    // Predicated region
    $region18: #{tpu_custom_call.1} parent=1 // pred_check
      _
    $region19: #{tpu_custom_call.1} parent=1 // pred_check_branch
      %35 = sbr.rel (0) target = $region21
    $region20: #{tpu_custom_call.1} parent=1 // pred_region
      _
    $region21: #{tpu_custom_call.1} parent=1 // pred_fallthru
      _
    // Predicated region
    $region22: #{tpu_custom_call.1} parent=1 // pred_check
      _
    $region23: #{tpu_custom_call.1} parent=1 // pred_check_branch
      %37 = sbr.rel (0) target = $region25
    $region24: #{tpu_custom_call.1} parent=1 // pred_region
      %39 = vsyncadd [#allocation6], 0
      %s40 = sshll.u32 %s5, 4
      %s41 = int_to_ptr.hbm [resolvable:$true] %s40
      %s42 = sshll.u32 [#allocation5], 4
      %s43 = int_to_ptr.vmem [resolvable:$true] %s42
      %48 = dma.hbm_to_vmem [thread:$0]  %s41, 2048, %s43, [#allocation6], 128, 128, 8
    $region25: #{tpu_custom_call.1} parent=1 // pred_fallthru
      _
    // Predicated region
    $region26: #{tpu_custom_call.1} parent=1 // pred_check
      _
    $region27: #{tpu_custom_call.1} parent=1 // pred_check_branch
      %50 = sbr.rel (0) target = $region29
    $region28: #{tpu_custom_call.1} parent=1 // pred_region
      _
    $region29: #{tpu_custom_call.1} parent=1 // pred_fallthru
      _
    // Predicated region
    $region30: #{tpu_custom_call.1} parent=1 // pred_check
      _
    $region31: #{tpu_custom_call.1} parent=1 // pred_check_branch
      %52 = sbr.rel (0) target = $region33
    $region32: #{tpu_custom_call.1} parent=1 // pred_region
      _
    $region33: #{tpu_custom_call.1} parent=1 // pred_fallthru
      _
    // Predicated region
    $region34: #{tpu_custom_call.1} parent=1 // pred_check
      _
    $region35: #{tpu_custom_call.1} parent=1 // pred_check_branch
      %54 = sbr.rel (0) target = $region37
    $region36: #{tpu_custom_call.1} parent=1 // pred_region
      _
    $region37: #{tpu_custom_call.1} parent=1 // pred_fallthru
      _
    // Predicated region
    $region38: #{tpu_custom_call.1} parent=1 // pred_check
      _
    $region39: #{tpu_custom_call.1} parent=1 // pred_check_branch
      %56 = sbr.rel (0) target = $region41
    $region40: #{tpu_custom_call.1} parent=1 // pred_region
      %58 = dma.done [#allocation3], 128
    $region41: #{tpu_custom_call.1} parent=1 // pred_fallthru
      _
    // Predicated region
    $region42: #{tpu_custom_call.1} parent=1 // pred_check
      _
    $region43: #{tpu_custom_call.1} parent=1 // pred_check_branch
      %60 = sbr.rel (0) target = $region45
    $region44: #{tpu_custom_call.1} parent=1 // pred_region
      %62 = dma.done [#allocation6], 2048
    $region45: #{tpu_custom_call.1} parent=1 // pred_fallthru
      _
    %v63 = vld [vmem:[#allocation2] sm:$0xff]
    %v64 = vld [vmem:[%s1] sm:$0xff]
    %v65 = vld [vmem:[%s1 + $0x8] sm:$0xff]
    %v66 = vld [vmem:[%s1 + $0x10] sm:$0xff]
    %v67 = vld [vmem:[%s1 + $0x18] sm:$0xff]
    %v68 = vld [vmem:[%s2] sm:$0x1]
    %v70 = vperm.slane %v68, 0
    %vm72 = vcmask 261120
    %v74 = vsel %vm72, %v63, 0
    %76 = vmatpush.msra.mxu0 0.0
    %77 = vmatpush.msra.mxu0 0.0
    %78 = vmatpush.msra.mxu0 0.0
    %79 = vmatpush.msra.mxu0 0.0
    %80 = vmatpush.msra.mxu0 0.0
    %81 = vmatpush.msra.mxu0 0.0
    %82 = vmatpush.msra.mxu0 0.0
    %83 = vmatpush.msra.mxu0 0.0
    %84 = vmatpush.msra.mxu0 0.0
    %85 = vmatpush.msra.mxu0 0.0
    %86 = vmatpush.msra.mxu0 0.0
    %87 = vmatpush.msra.mxu0 0.0
    %88 = vmatpush.msra.mxu0 %v67
    %89 = vmatpush.msra.mxu0 %v66
    %90 = vmatpush.msra.mxu0 %v65
    %91 = vmatpush.msra.mxu0 %v64
    %92 = vmatmul.f32.gmra.mxu0 %v74
    %v93 = vpop.f32.mrf.mxu0
    %v94 = vadd.f32 %v70, %v93
    %95 = vdwg.mxu0
    %v96 = vmax.f32 %v94, 0.0
    %v97 = vld [vmem:[%s3] sm:$0xff]
    %v98 = vld [vmem:[%s3 + $0x8] sm:$0xff]
    %v99 = vld [vmem:[%s3 + $0x10] sm:$0xff]
    %v100 = vld [vmem:[%s3 + $0x18] sm:$0xff]
    %v101 = vld [vmem:[%s3 + $0x20] sm:$0xff]
    %v102 = vld [vmem:[%s3 + $0x28] sm:$0xff]
    %v103 = vld [vmem:[%s3 + $0x30] sm:$0xff]
    %v104 = vld [vmem:[%s3 + $0x38] sm:$0xff]
    %v105 = vld [vmem:[%s3 + $0x40] sm:$0xff]
    %v106 = vld [vmem:[%s3 + $0x48] sm:$0xff]
    %v107 = vld [vmem:[%s3 + $0x50] sm:$0xff]
    %v108 = vld [vmem:[%s3 + $0x58] sm:$0xff]
    %v109 = vld [vmem:[%s3 + $0x60] sm:$0xff]
    %v110 = vld [vmem:[%s3 + $0x68] sm:$0xff]
    %v111 = vld [vmem:[%s3 + $0x70] sm:$0xff]
    %v112 = vld [vmem:[%s3 + $0x78] sm:$0xff]
    %v113 = vld [vmem:[%s4] sm:$0x1]
    %v115 = vperm.slane %v113, 0
    %117 = vmatpush.msra.mxu0 %v112
    %118 = vmatpush.msra.mxu0 %v111
    %119 = vmatpush.msra.mxu0 %v110
    %120 = vmatpush.msra.mxu0 %v109
    %121 = vmatpush.msra.mxu0 %v108
    %122 = vmatpush.msra.mxu0 %v107
    %123 = vmatpush.msra.mxu0 %v106
    %124 = vmatpush.msra.mxu0 %v105
    %125 = vmatpush.msra.mxu0 %v104
    %126 = vmatpush.msra.mxu0 %v103
    %127 = vmatpush.msra.mxu0 %v102
    %128 = vmatpush.msra.mxu0 %v101
    %129 = vmatpush.msra.mxu0 %v100
    %130 = vmatpush.msra.mxu0 %v99
    %131 = vmatpush.msra.mxu0 %v98
    %132 = vmatpush.msra.mxu0 %v97
    %133 = vmatmul.f32.gmra.mxu0 %v96
    %v134 = vpop.f32.mrf.mxu0
    %v135 = vadd.f32 %v115, %v134
    %136 = vdwg.mxu0
    %v137 = vtanh.pop %v135
    %v138 = vld [vmem:[#allocation5] sm:$0xff]
    %v139 = vld [vmem:[#allocation5 + $0x8] sm:$0xff]
    %v140 = vld [vmem:[#allocation5 + $0x10] sm:$0xff]
    %v141 = vld [vmem:[#allocation5 + $0x18] sm:$0xff]
    %v142 = vld [vmem:[#allocation5 + $0x20] sm:$0xff]
    %v143 = vld [vmem:[#allocation5 + $0x28] sm:$0xff]
    %v144 = vld [vmem:[#allocation5 + $0x30] sm:$0xff]
    %v145 = vld [vmem:[#allocation5 + $0x38] sm:$0xff]
    %v146 = vld [vmem:[#allocation5 + $0x40] sm:$0xff]
    %v147 = vld [vmem:[#allocation5 + $0x48] sm:$0xff]
    %v148 = vld [vmem:[#allocation5 + $0x50] sm:$0xff]
    %v149 = vld [vmem:[#allocation5 + $0x58] sm:$0xff]
    %v150 = vld [vmem:[#allocation5 + $0x60] sm:$0xff]
    %v151 = vld [vmem:[#allocation5 + $0x68] sm:$0xff]
    %v152 = vld [vmem:[#allocation5 + $0x70] sm:$0xff]
    %v153 = vld [vmem:[#allocation5 + $0x78] sm:$0xff]
    %v154 = vld [vmem:[%s6] sm:$0x1]
    %v156 = vperm.slane %v154, 0
    %158 = vmatpush.msra.mxu0 %v153
    %159 = vmatpush.msra.mxu0 %v152
    %160 = vmatpush.msra.mxu0 %v151
    %161 = vmatpush.msra.mxu0 %v150
    %162 = vmatpush.msra.mxu0 %v149
    %163 = vmatpush.msra.mxu0 %v148
    %164 = vmatpush.msra.mxu0 %v147
    %165 = vmatpush.msra.mxu0 %v146
    %166 = vmatpush.msra.mxu0 %v145
    %167 = vmatpush.msra.mxu0 %v144
    %168 = vmatpush.msra.mxu0 %v143
    %169 = vmatpush.msra.mxu0 %v142
    %170 = vmatpush.msra.mxu0 %v141
    %171 = vmatpush.msra.mxu0 %v140
    %172 = vmatpush.msra.mxu0 %v139
    %173 = vmatpush.msra.mxu0 %v138
    %174 = vmatmul.f32.gmra.mxu0 %v137
    %v175 = vpop.f32.mrf.mxu0
    %v176 = vadd.f32 %v156, %v175
    %177 = vdwg.mxu0
    %v178 = vmax.f32 %v176, 0.0
    %v179 = vld [vmem:[%s7] sm:$0xff]
    %v180 = vld [vmem:[%s7 + $0x8] sm:$0xff]
    %v181 = vld [vmem:[%s7 + $0x10] sm:$0xff]
    %v182 = vld [vmem:[%s7 + $0x18] sm:$0xff]
    %v183 = vld [vmem:[%s7 + $0x20] sm:$0xff]
    %v184 = vld [vmem:[%s7 + $0x28] sm:$0xff]
    %v185 = vld [vmem:[%s7 + $0x30] sm:$0xff]
    %v186 = vld [vmem:[%s7 + $0x38] sm:$0xff]
    %v187 = vld [vmem:[%s7 + $0x40] sm:$0xff]
    %v188 = vld [vmem:[%s7 + $0x48] sm:$0xff]
    %v189 = vld [vmem:[%s7 + $0x50] sm:$0xff]
    %v190 = vld [vmem:[%s7 + $0x58] sm:$0xff]
    %v191 = vld [vmem:[%s7 + $0x60] sm:$0xff]
    %v192 = vld [vmem:[%s7 + $0x68] sm:$0xff]
    %v193 = vld [vmem:[%s7 + $0x70] sm:$0xff]
    %v194 = vld [vmem:[%s7 + $0x78] sm:$0xff]
    %v195 = vld [vmem:[%s8] sm:$0x1]
    %v197 = vperm.slane %v195, 0
    %199 = vmatpush.msra.mxu0 %v194
    %200 = vmatpush.msra.mxu0 %v193
    %201 = vmatpush.msra.mxu0 %v192
    %202 = vmatpush.msra.mxu0 %v191
    %203 = vmatpush.msra.mxu0 %v190
    %204 = vmatpush.msra.mxu0 %v189
    %205 = vmatpush.msra.mxu0 %v188
    %206 = vmatpush.msra.mxu0 %v187
    %207 = vmatpush.msra.mxu0 %v186
    %208 = vmatpush.msra.mxu0 %v185
    %209 = vmatpush.msra.mxu0 %v184
    %210 = vmatpush.msra.mxu0 %v183
    %211 = vmatpush.msra.mxu0 %v182
    %212 = vmatpush.msra.mxu0 %v181
    %213 = vmatpush.msra.mxu0 %v180
    %214 = vmatpush.msra.mxu0 %v179
    %215 = vmatmul.f32.gmra.mxu0 %v178
    %v216 = vpop.f32.mrf.mxu0
    %v217 = vadd.f32 %v197, %v216
    %218 = vdwg.mxu0
    %219 = vst.msk [vmem:[#allocation7] sm:$0xff] %vm72, %v217
    // Predicated region
    $region46: #{tpu_custom_call.1} parent=1 // pred_check
      _
    $region47: #{tpu_custom_call.1} parent=1 // pred_check_branch
      %221 = sbr.rel (0) target = $region49
    $region48: #{tpu_custom_call.1} parent=1 // pred_region
      %223 = vsyncadd [#allocation4], 0
      %s225 = sshll.u32 [#allocation7], 4
      %s226 = int_to_ptr.vmem [resolvable:$true] %s225
      %s227 = sshll.u32 %s9, 4
      %s228 = int_to_ptr.hbm [resolvable:$true] %s227
      %230 = dma.vmem_to_hbm [thread:$0]  %s226, 128, %s228, [#allocation4]
    $region49: #{tpu_custom_call.1} parent=1 // pred_fallthru
      _
    // Predicated region
    $region50: #{tpu_custom_call.1} parent=1 // pred_check
      _
    $region51: #{tpu_custom_call.1} parent=1 // pred_check_branch
      %232 = sbr.rel (0) target = $region53
    $region52: #{tpu_custom_call.1} parent=1 // pred_region
      %234 = dma.done [#allocation4], 128
    $region53: #{tpu_custom_call.1} parent=1 // pred_fallthru
      _
    %235 = vsyncpa [#allocation3], 1
    %236 = vsyncpa [#allocation6], 1
    %237 = vsyncpa [#allocation4], 1

</llo_original>
